<compile_context>
chip_gen: v6e
topology: v6e:2x2x1
jax: 0.10.0
libtpu: 0.0.40
codegen_flags: <defaults>
</compile_context>

<pallas_src>
import functools

import jax
import jax.numpy as jnp
from jax.experimental import pallas as pl
from jax.experimental.pallas import tpu as pltpu


def _shift_lanes(x, offset):
    """y[:, r] = x[:, (r + offset) mod HW].  Wrapped slots are masked later.

    Implemented as two static lane slices + concat (unambiguous roll)."""
    hw = x.shape[-1]
    o = offset % hw
    if o == 0:
        return x
    return jnp.concatenate([x[:, o:], x[:, :o]], axis=-1)


def _rdb_conv_kernel(x_ref, w_ref, b_ref, out_ref, *, H, W, KH, KW):
    # x_ref  : (1, Cin, H*W)   one batch element, channels-first, flat spatial
    # w_ref  : (KH*KW, G, Cin) tap-major weights
    # b_ref  : (G, 1)          bias
    # out_ref: (1, G, H*W)     relu(conv(x)) only (concat happens outside)
    HW = x_ref.shape[2]
    G = w_ref.shape[1]

    x = x_ref[0]                                        # (Cin, HW)

    # Recover (h, w) per flattened spatial position without integer div/mod
    # (exact in f32 for HW < 2**24).
    r_idx = jax.lax.broadcasted_iota(jnp.int32, (1, HW), 1).astype(jnp.float32)
    h_f = jnp.floor((r_idx + 0.5) * (1.0 / float(W)))
    w_f = r_idx - h_f * float(W)

    acc = jnp.zeros((G, HW), jnp.float32)
    for kh in range(KH):
        for kw in range(KW):
            dh = kh - KH // 2
            dw = kw - KW // 2
            patch = _shift_lanes(x, dh * W + dw)        # (Cin, HW)
            # Zero positions whose source pixel falls in the conv zero padding
            # (this also covers the lane-wrap slots of the shift).
            conds = []
            if dh < 0:
                conds.append(h_f >= float(-dh))
            elif dh > 0:
                conds.append(h_f <= float(H - 1 - dh))
            if dw < 0:
                conds.append(w_f >= float(-dw))
            elif dw > 0:
                conds.append(w_f <= float(W - 1 - dw))
            if conds:
                m = conds[0]
                for c in conds[1:]:
                    m = jnp.logical_and(m, c)
                patch = jnp.where(m, patch, 0.0)
            acc = acc + jnp.dot(w_ref[kh * KW + kw], patch,
                                preferred_element_type=jnp.float32)

    acc = acc + b_ref[...].astype(jnp.float32)          # (G, HW) + (G, 1)
    out_ref[0] = jnp.maximum(acc, 0.0).astype(out_ref.dtype)


def rdb_conv(x_nchw, weight, bias):
    """x_nchw: (N, Cin, H, W); weight: (G, Cin, KH, KW); bias: (G,).
    Returns (N, Cin + G, H, W) == torch.cat((x, relu(conv(x))), dim=1)."""
    N, Cin, H, W = x_nchw.shape
    G, _, KH, KW = weight.shape
    assert KH % 2 == 1 and KW % 2 == 1, "odd kernel sizes only"
    HW = H * W

    x_flat = x_nchw.reshape(N, Cin, HW)                          # free reshape
    w_taps = jnp.transpose(weight, (2, 3, 0, 1)).reshape(KH * KW, G, Cin)
    b2d = bias.reshape(G, 1)

    kernel = functools.partial(_rdb_conv_kernel, H=H, W=W, KH=KH, KW=KW)
    conv_flat = pl.pallas_call(
        kernel,
        out_shape=jax.ShapeDtypeStruct((N, G, HW), x_nchw.dtype),
        grid_spec=pltpu.PrefetchScalarGridSpec(
            num_scalar_prefetch=0,
            grid=(N,),
            in_specs=[
                pl.BlockSpec((1, Cin, HW), lambda n: (n, 0, 0)),
                pl.BlockSpec((KH * KW, G, Cin), lambda n: (0, 0, 0)),
                pl.BlockSpec((G, 1), lambda n: (0, 0)),
            ],
            out_specs=pl.BlockSpec((1, G, HW), lambda n: (n, 0, 0)),
        ),
        compiler_params=pltpu.CompilerParams(
            dimension_semantics=("parallel",),
            vmem_limit_bytes=32 * 1024 * 1024,
        ),
    )(x_flat, w_taps, b2d)

    conv_out = conv_flat.reshape(N, G, H, W)                     # free reshape
    # Residual-dense concat done by XLA; x never passes through the kernel.
    # (When chaining RDBConv layers, prefer keeping x and conv_out separate.)
    return jnp.concatenate([x_nchw, conv_out], axis=1)


def _reference(x_nchw, weight, bias):
    # Pure-JAX reference (lax conv) for a sanity check.
    ph, pw = weight.shape[2] // 2, weight.shape[3] // 2
    out = jax.lax.conv_general_dilated(
        x_nchw, weight, window_strides=(1, 1),
        padding=((ph, ph), (pw, pw)),
        dimension_numbers=("NCHW", "OIHW", "NCHW"))
    out = jnp.maximum(out + bias[None, :, None, None], 0.0)
    return jnp.concatenate([x_nchw, out], axis=1)


if __name__ == "__main__":
    key = jax.random.PRNGKey(0)
    k_x, k_w, k_b = jax.random.split(key, 3)

    N, Cin, H, W = 2, 4, 16, 16
    G = 8
    KSIZE = 3

    x = jax.random.normal(k_x, (N, Cin, H, W), dtype=jnp.float32)
    # Deterministic synthetic params (shapes match nn.Conv2d(Cin, G, 3, bias=True)).
    fan_in = Cin * KSIZE * KSIZE
    bound = 1.0 / (fan_in ** 0.5)
    weight = jax.random.uniform(k_w, (G, Cin, KSIZE, KSIZE),
                                minval=-bound, maxval=bound, dtype=jnp.float32)
    bias = jax.random.uniform(k_b, (G,), minval=-bound, maxval=bound,
                              dtype=jnp.float32)

    y = rdb_conv(x, weight, bias)
    jax.block_until_ready(y)

    y_ref = _reference(x, weight, bias)
    assert y.shape == (N, Cin + G, H, W)
    assert jnp.allclose(y, y_ref, atol=1e-5, rtol=1e-5)

    print("KERNEL_OK")
</pallas_src>

<mosaic_0001>
module attributes {stable_mosaic.version = 11 : i64} {
  func.func @_rdb_conv_kernel(%arg0: i32, %arg1: memref<1x4x256xf32, #tpu.memory_space<vmem>>, %arg2: memref<9x8x4xf32, #tpu.memory_space<vmem>>, %arg3: memref<8x1xf32, #tpu.memory_space<vmem>>, %arg4: memref<1x8x256xf32, #tpu.memory_space<vmem>>) attributes {dimension_semantics = [#tpu.dimension_semantics<parallel>], iteration_bounds = array<i64: 2>, scalar_prefetch = 0 : i64, scratch_operands = 0 : i64, tpu.core_type = #tpu.core_type<tc>, window_params = [{transform_indices = @transform_0, window_bounds = array<i64: 1, 4, 256>}, {pipeline_mode = #tpu.pipeline_mode<synchronous>, transform_indices = @transform_1, window_bounds = array<i64: 9, 8, 4>}, {pipeline_mode = #tpu.pipeline_mode<synchronous>, transform_indices = @transform_2, window_bounds = array<i64: 8, 1>}, {transform_indices = @transform_3, window_bounds = array<i64: 1, 8, 256>}]} {
    %c0 = arith.constant 0 : index
    %c0_0 = arith.constant 0 : index
    %c0_1 = arith.constant 0 : index
    %0 = vector.load %arg1[%c0, %c0_0, %c0_1] : memref<1x4x256xf32, #tpu.memory_space<vmem>>, vector<1x4x256xf32>
    %1 = vector.shape_cast %0 : vector<1x4x256xf32> to vector<4x256xf32>
    %2 = tpu.iota {dimensions = array<i32: 1>} : vector<1x256xi32>
    %3 = arith.sitofp %2 : vector<1x256xi32> to vector<1x256xf32>
    %cst = arith.constant 5.000000e-01 : f32
    %4 = vector.broadcast %cst : f32 to vector<1x256xf32>
    %5 = arith.addf %3, %4 : vector<1x256xf32>
    %cst_2 = arith.constant 6.250000e-02 : f32
    %6 = vector.broadcast %cst_2 : f32 to vector<1x256xf32>
    %7 = arith.mulf %5, %6 : vector<1x256xf32>
    %8 = math.floor %7 : vector<1x256xf32>
    %cst_3 = arith.constant 1.600000e+01 : f32
    %9 = vector.broadcast %cst_3 : f32 to vector<1x256xf32>
    %10 = arith.mulf %8, %9 : vector<1x256xf32>
    %11 = arith.subf %3, %10 : vector<1x256xf32>
    %cst_4 = arith.constant 0.000000e+00 : f32
    %12 = vector.broadcast %cst_4 : f32 to vector<8x256xf32>
    %13 = vector.extract_strided_slice %1 {offsets = [0, 239], sizes = [4, 17], strides = [1, 1]} : vector<4x256xf32> to vector<4x17xf32>
    %14 = vector.extract_strided_slice %1 {offsets = [0, 0], sizes = [4, 239], strides = [1, 1]} : vector<4x256xf32> to vector<4x239xf32>
    %15 = tpu.concatenate %13, %14 in 1 : vector<4x17xf32>, vector<4x239xf32> -> vector<4x256xf32>
    %cst_5 = arith.constant 1.000000e+00 : f32
    %16 = vector.broadcast %cst_5 : f32 to vector<1x256xf32>
    %17 = arith.cmpf oge, %8, %16 : vector<1x256xf32>
    %cst_6 = arith.constant 1.000000e+00 : f32
    %18 = vector.broadcast %cst_6 : f32 to vector<1x256xf32>
    %19 = arith.cmpf oge, %11, %18 : vector<1x256xf32>
    %20 = arith.andi %17, %19 : vector<1x256xi1>
    %cst_7 = arith.constant 0.000000e+00 : f32
    %21 = vector.shape_cast %20 : vector<1x256xi1> to vector<1x256xi1>
    %22 = vector.broadcast %21 : vector<1x256xi1> to vector<4x256xi1>
    %23 = vector.broadcast %cst_7 : f32 to vector<4x256xf32>
    %24 = arith.select %22, %15, %23 : vector<4x256xi1>, vector<4x256xf32>
    %c0_8 = arith.constant 0 : index
    %c0_9 = arith.constant 0 : index
    %c0_10 = arith.constant 0 : index
    %25 = vector.load %arg2[%c0_8, %c0_9, %c0_10] : memref<9x8x4xf32, #tpu.memory_space<vmem>>, vector<1x8x4xf32>
    %26 = vector.shape_cast %25 : vector<1x8x4xf32> to vector<8x4xf32>
    %cst_11 = arith.constant dense<0.000000e+00> : vector<8x256xf32>
    %27 = tpu.matmul %26, %24, %cst_11 {dimension_numbers = #tpu.dot_dimension_numbers<[1], [0], [0], [1], [0, 0, 1, 1], [], []>} : vector<8x4xf32>, vector<4x256xf32>, vector<8x256xf32> -> vector<8x256xf32>
    %28 = arith.addf %12, %27 : vector<8x256xf32>
    %29 = vector.extract_strided_slice %1 {offsets = [0, 240], sizes = [4, 16], strides = [1, 1]} : vector<4x256xf32> to vector<4x16xf32>
    %30 = vector.extract_strided_slice %1 {offsets = [0, 0], sizes = [4, 240], strides = [1, 1]} : vector<4x256xf32> to vector<4x240xf32>
    %31 = tpu.concatenate %29, %30 in 1 : vector<4x16xf32>, vector<4x240xf32> -> vector<4x256xf32>
    %cst_12 = arith.constant 1.000000e+00 : f32
    %32 = vector.broadcast %cst_12 : f32 to vector<1x256xf32>
    %33 = arith.cmpf oge, %8, %32 : vector<1x256xf32>
    %cst_13 = arith.constant 0.000000e+00 : f32
    %34 = vector.shape_cast %33 : vector<1x256xi1> to vector<1x256xi1>
    %35 = vector.broadcast %34 : vector<1x256xi1> to vector<4x256xi1>
    %36 = vector.broadcast %cst_13 : f32 to vector<4x256xf32>
    %37 = arith.select %35, %31, %36 : vector<4x256xi1>, vector<4x256xf32>
    %c1 = arith.constant 1 : index
    %c0_14 = arith.constant 0 : index
    %c0_15 = arith.constant 0 : index
    %38 = vector.load %arg2[%c1, %c0_14, %c0_15] : memref<9x8x4xf32, #tpu.memory_space<vmem>>, vector<1x8x4xf32>
    %39 = vector.shape_cast %38 : vector<1x8x4xf32> to vector<8x4xf32>
    %cst_16 = arith.constant dense<0.000000e+00> : vector<8x256xf32>
    %40 = tpu.matmul %39, %37, %cst_16 {dimension_numbers = #tpu.dot_dimension_numbers<[1], [0], [0], [1], [0, 0, 1, 1], [], []>} : vector<8x4xf32>, vector<4x256xf32>, vector<8x256xf32> -> vector<8x256xf32>
    %41 = arith.addf %28, %40 : vector<8x256xf32>
    %42 = vector.extract_strided_slice %1 {offsets = [0, 241], sizes = [4, 15], strides = [1, 1]} : vector<4x256xf32> to vector<4x15xf32>
    %43 = vector.extract_strided_slice %1 {offsets = [0, 0], sizes = [4, 241], strides = [1, 1]} : vector<4x256xf32> to vector<4x241xf32>
    %44 = tpu.concatenate %42, %43 in 1 : vector<4x15xf32>, vector<4x241xf32> -> vector<4x256xf32>
    %cst_17 = arith.constant 1.000000e+00 : f32
    %45 = vector.broadcast %cst_17 : f32 to vector<1x256xf32>
    %46 = arith.cmpf oge, %8, %45 : vector<1x256xf32>
    %cst_18 = arith.constant 1.400000e+01 : f32
    %47 = vector.broadcast %cst_18 : f32 to vector<1x256xf32>
    %48 = arith.cmpf ole, %11, %47 : vector<1x256xf32>
    %49 = arith.andi %46, %48 : vector<1x256xi1>
    %cst_19 = arith.constant 0.000000e+00 : f32
    %50 = vector.shape_cast %49 : vector<1x256xi1> to vector<1x256xi1>
    %51 = vector.broadcast %50 : vector<1x256xi1> to vector<4x256xi1>
    %52 = vector.broadcast %cst_19 : f32 to vector<4x256xf32>
    %53 = arith.select %51, %44, %52 : vector<4x256xi1>, vector<4x256xf32>
    %c2 = arith.constant 2 : index
    %c0_20 = arith.constant 0 : index
    %c0_21 = arith.constant 0 : index
    %54 = vector.load %arg2[%c2, %c0_20, %c0_21] : memref<9x8x4xf32, #tpu.memory_space<vmem>>, vector<1x8x4xf32>
    %55 = vector.shape_cast %54 : vector<1x8x4xf32> to vector<8x4xf32>
    %cst_22 = arith.constant dense<0.000000e+00> : vector<8x256xf32>
    %56 = tpu.matmul %55, %53, %cst_22 {dimension_numbers = #tpu.dot_dimension_numbers<[1], [0], [0], [1], [0, 0, 1, 1], [], []>} : vector<8x4xf32>, vector<4x256xf32>, vector<8x256xf32> -> vector<8x256xf32>
    %57 = arith.addf %41, %56 : vector<8x256xf32>
    %58 = vector.extract_strided_slice %1 {offsets = [0, 255], sizes = [4, 1], strides = [1, 1]} : vector<4x256xf32> to vector<4x1xf32>
    %59 = vector.extract_strided_slice %1 {offsets = [0, 0], sizes = [4, 255], strides = [1, 1]} : vector<4x256xf32> to vector<4x255xf32>
    %60 = tpu.concatenate %58, %59 in 1 : vector<4x1xf32>, vector<4x255xf32> -> vector<4x256xf32>
    %cst_23 = arith.constant 1.000000e+00 : f32
    %61 = vector.broadcast %cst_23 : f32 to vector<1x256xf32>
    %62 = arith.cmpf oge, %11, %61 : vector<1x256xf32>
    %cst_24 = arith.constant 0.000000e+00 : f32
    %63 = vector.shape_cast %62 : vector<1x256xi1> to vector<1x256xi1>
    %64 = vector.broadcast %63 : vector<1x256xi1> to vector<4x256xi1>
    %65 = vector.broadcast %cst_24 : f32 to vector<4x256xf32>
    %66 = arith.select %64, %60, %65 : vector<4x256xi1>, vector<4x256xf32>
    %c3 = arith.constant 3 : index
    %c0_25 = arith.constant 0 : index
    %c0_26 = arith.constant 0 : index
    %67 = vector.load %arg2[%c3, %c0_25, %c0_26] : memref<9x8x4xf32, #tpu.memory_space<vmem>>, vector<1x8x4xf32>
    %68 = vector.shape_cast %67 : vector<1x8x4xf32> to vector<8x4xf32>
    %cst_27 = arith.constant dense<0.000000e+00> : vector<8x256xf32>
    %69 = tpu.matmul %68, %66, %cst_27 {dimension_numbers = #tpu.dot_dimension_numbers<[1], [0], [0], [1], [0, 0, 1, 1], [], []>} : vector<8x4xf32>, vector<4x256xf32>, vector<8x256xf32> -> vector<8x256xf32>
    %70 = arith.addf %57, %69 : vector<8x256xf32>
    %c4 = arith.constant 4 : index
    %c0_28 = arith.constant 0 : index
    %c0_29 = arith.constant 0 : index
    %71 = vector.load %arg2[%c4, %c0_28, %c0_29] : memref<9x8x4xf32, #tpu.memory_space<vmem>>, vector<1x8x4xf32>
    %72 = vector.shape_cast %71 : vector<1x8x4xf32> to vector<8x4xf32>
    %cst_30 = arith.constant dense<0.000000e+00> : vector<8x256xf32>
    %73 = tpu.matmul %72, %1, %cst_30 {dimension_numbers = #tpu.dot_dimension_numbers<[1], [0], [0], [1], [0, 0, 1, 1], [], []>} : vector<8x4xf32>, vector<4x256xf32>, vector<8x256xf32> -> vector<8x256xf32>
    %74 = arith.addf %70, %73 : vector<8x256xf32>
    %75 = vector.extract_strided_slice %1 {offsets = [0, 1], sizes = [4, 255], strides = [1, 1]} : vector<4x256xf32> to vector<4x255xf32>
    %76 = vector.extract_strided_slice %1 {offsets = [0, 0], sizes = [4, 1], strides = [1, 1]} : vector<4x256xf32> to vector<4x1xf32>
    %77 = tpu.concatenate %75, %76 in 1 : vector<4x255xf32>, vector<4x1xf32> -> vector<4x256xf32>
    %cst_31 = arith.constant 1.400000e+01 : f32
    %78 = vector.broadcast %cst_31 : f32 to vector<1x256xf32>
    %79 = arith.cmpf ole, %11, %78 : vector<1x256xf32>
    %cst_32 = arith.constant 0.000000e+00 : f32
    %80 = vector.shape_cast %79 : vector<1x256xi1> to vector<1x256xi1>
    %81 = vector.broadcast %80 : vector<1x256xi1> to vector<4x256xi1>
    %82 = vector.broadcast %cst_32 : f32 to vector<4x256xf32>
    %83 = arith.select %81, %77, %82 : vector<4x256xi1>, vector<4x256xf32>
    %c5 = arith.constant 5 : index
    %c0_33 = arith.constant 0 : index
    %c0_34 = arith.constant 0 : index
    %84 = vector.load %arg2[%c5, %c0_33, %c0_34] : memref<9x8x4xf32, #tpu.memory_space<vmem>>, vector<1x8x4xf32>
    %85 = vector.shape_cast %84 : vector<1x8x4xf32> to vector<8x4xf32>
    %cst_35 = arith.constant dense<0.000000e+00> : vector<8x256xf32>
    %86 = tpu.matmul %85, %83, %cst_35 {dimension_numbers = #tpu.dot_dimension_numbers<[1], [0], [0], [1], [0, 0, 1, 1], [], []>} : vector<8x4xf32>, vector<4x256xf32>, vector<8x256xf32> -> vector<8x256xf32>
    %87 = arith.addf %74, %86 : vector<8x256xf32>
    %88 = vector.extract_strided_slice %1 {offsets = [0, 15], sizes = [4, 241], strides = [1, 1]} : vector<4x256xf32> to vector<4x241xf32>
    %89 = vector.extract_strided_slice %1 {offsets = [0, 0], sizes = [4, 15], strides = [1, 1]} : vector<4x256xf32> to vector<4x15xf32>
    %90 = tpu.concatenate %88, %89 in 1 : vector<4x241xf32>, vector<4x15xf32> -> vector<4x256xf32>
    %cst_36 = arith.constant 1.400000e+01 : f32
    %91 = vector.broadcast %cst_36 : f32 to vector<1x256xf32>
    %92 = arith.cmpf ole, %8, %91 : vector<1x256xf32>
    %cst_37 = arith.constant 1.000000e+00 : f32
    %93 = vector.broadcast %cst_37 : f32 to vector<1x256xf32>
    %94 = arith.cmpf oge, %11, %93 : vector<1x256xf32>
    %95 = arith.andi %92, %94 : vector<1x256xi1>
    %cst_38 = arith.constant 0.000000e+00 : f32
    %96 = vector.shape_cast %95 : vector<1x256xi1> to vector<1x256xi1>
    %97 = vector.broadcast %96 : vector<1x256xi1> to vector<4x256xi1>
    %98 = vector.broadcast %cst_38 : f32 to vector<4x256xf32>
    %99 = arith.select %97, %90, %98 : vector<4x256xi1>, vector<4x256xf32>
    %c6 = arith.constant 6 : index
    %c0_39 = arith.constant 0 : index
    %c0_40 = arith.constant 0 : index
    %100 = vector.load %arg2[%c6, %c0_39, %c0_40] : memref<9x8x4xf32, #tpu.memory_space<vmem>>, vector<1x8x4xf32>
    %101 = vector.shape_cast %100 : vector<1x8x4xf32> to vector<8x4xf32>
    %cst_41 = arith.constant dense<0.000000e+00> : vector<8x256xf32>
    %102 = tpu.matmul %101, %99, %cst_41 {dimension_numbers = #tpu.dot_dimension_numbers<[1], [0], [0], [1], [0, 0, 1, 1], [], []>} : vector<8x4xf32>, vector<4x256xf32>, vector<8x256xf32> -> vector<8x256xf32>
    %103 = arith.addf %87, %102 : vector<8x256xf32>
    %104 = vector.extract_strided_slice %1 {offsets = [0, 16], sizes = [4, 240], strides = [1, 1]} : vector<4x256xf32> to vector<4x240xf32>
    %105 = vector.extract_strided_slice %1 {offsets = [0, 0], sizes = [4, 16], strides = [1, 1]} : vector<4x256xf32> to vector<4x16xf32>
    %106 = tpu.concatenate %104, %105 in 1 : vector<4x240xf32>, vector<4x16xf32> -> vector<4x256xf32>
    %cst_42 = arith.constant 1.400000e+01 : f32
    %107 = vector.broadcast %cst_42 : f32 to vector<1x256xf32>
    %108 = arith.cmpf ole, %8, %107 : vector<1x256xf32>
    %cst_43 = arith.constant 0.000000e+00 : f32
    %109 = vector.shape_cast %108 : vector<1x256xi1> to vector<1x256xi1>
    %110 = vector.broadcast %109 : vector<1x256xi1> to vector<4x256xi1>
    %111 = vector.broadcast %cst_43 : f32 to vector<4x256xf32>
    %112 = arith.select %110, %106, %111 : vector<4x256xi1>, vector<4x256xf32>
    %c7 = arith.constant 7 : index
    %c0_44 = arith.constant 0 : index
    %c0_45 = arith.constant 0 : index
    %113 = vector.load %arg2[%c7, %c0_44, %c0_45] : memref<9x8x4xf32, #tpu.memory_space<vmem>>, vector<1x8x4xf32>
    %114 = vector.shape_cast %113 : vector<1x8x4xf32> to vector<8x4xf32>
    %cst_46 = arith.constant dense<0.000000e+00> : vector<8x256xf32>
    %115 = tpu.matmul %114, %112, %cst_46 {dimension_numbers = #tpu.dot_dimension_numbers<[1], [0], [0], [1], [0, 0, 1, 1], [], []>} : vector<8x4xf32>, vector<4x256xf32>, vector<8x256xf32> -> vector<8x256xf32>
    %116 = arith.addf %103, %115 : vector<8x256xf32>
    %117 = vector.extract_strided_slice %1 {offsets = [0, 17], sizes = [4, 239], strides = [1, 1]} : vector<4x256xf32> to vector<4x239xf32>
    %118 = vector.extract_strided_slice %1 {offsets = [0, 0], sizes = [4, 17], strides = [1, 1]} : vector<4x256xf32> to vector<4x17xf32>
    %119 = tpu.concatenate %117, %118 in 1 : vector<4x239xf32>, vector<4x17xf32> -> vector<4x256xf32>
    %cst_47 = arith.constant 1.400000e+01 : f32
    %120 = vector.broadcast %cst_47 : f32 to vector<1x256xf32>
    %121 = arith.cmpf ole, %8, %120 : vector<1x256xf32>
    %cst_48 = arith.constant 1.400000e+01 : f32
    %122 = vector.broadcast %cst_48 : f32 to vector<1x256xf32>
    %123 = arith.cmpf ole, %11, %122 : vector<1x256xf32>
    %124 = arith.andi %121, %123 : vector<1x256xi1>
    %cst_49 = arith.constant 0.000000e+00 : f32
    %125 = vector.shape_cast %124 : vector<1x256xi1> to vector<1x256xi1>
    %126 = vector.broadcast %125 : vector<1x256xi1> to vector<4x256xi1>
    %127 = vector.broadcast %cst_49 : f32 to vector<4x256xf32>
    %128 = arith.select %126, %119, %127 : vector<4x256xi1>, vector<4x256xf32>
    %c8 = arith.constant 8 : index
    %c0_50 = arith.constant 0 : index
    %c0_51 = arith.constant 0 : index
    %129 = vector.load %arg2[%c8, %c0_50, %c0_51] : memref<9x8x4xf32, #tpu.memory_space<vmem>>, vector<1x8x4xf32>
    %130 = vector.shape_cast %129 : vector<1x8x4xf32> to vector<8x4xf32>
    %cst_52 = arith.constant dense<0.000000e+00> : vector<8x256xf32>
    %131 = tpu.matmul %130, %128, %cst_52 {dimension_numbers = #tpu.dot_dimension_numbers<[1], [0], [0], [1], [0, 0, 1, 1], [], []>} : vector<8x4xf32>, vector<4x256xf32>, vector<8x256xf32> -> vector<8x256xf32>
    %132 = arith.addf %116, %131 : vector<8x256xf32>
    %c0_53 = arith.constant 0 : index
    %c0_54 = arith.constant 0 : index
    %133 = vector.load %arg3[%c0_53, %c0_54] : memref<8x1xf32, #tpu.memory_space<vmem>>, vector<8x1xf32>
    %134 = vector.broadcast %133 : vector<8x1xf32> to vector<8x256xf32>
    %135 = arith.addf %132, %134 : vector<8x256xf32>
    %cst_55 = arith.constant 0.000000e+00 : f32
    %136 = vector.broadcast %cst_55 : f32 to vector<8x256xf32>
    %137 = arith.maximumf %135, %136 : vector<8x256xf32>
    %c0_56 = arith.constant 0 : index
    %c0_57 = arith.constant 0 : index
    %c0_58 = arith.constant 0 : index
    %138 = vector.load %arg4[%c0_56, %c0_57, %c0_58] : memref<1x8x256xf32, #tpu.memory_space<vmem>>, vector<1x8x256xf32>
    %139 = vector.shape_cast %138 : vector<1x8x256xf32> to vector<8x256xf32>
    %140 = vector.shape_cast %137 : vector<8x256xf32> to vector<1x8x256xf32>
    tpu.vector_store %arg4[%c0_56, %c0_57, %c0_58], %140 {strides = array<i32>} : memref<1x8x256xf32, #tpu.memory_space<vmem>>, vector<1x8x256xf32>,
    return
  }
  func.func @transform_0(%arg0: i32) -> (i32, i32, i32) {
    %c0_i32 = arith.constant 0 : i32
    %c0_i32_0 = arith.constant 0 : i32
    %c0_i32_1 = arith.constant 0 : i32
    return %arg0, %c0_i32, %c0_i32_0 : i32, i32, i32
  }
  func.func @transform_1(%arg0: i32) -> (i32, i32, i32) {
    %c0_i32 = arith.constant 0 : i32
    %c0_i32_0 = arith.constant 0 : i32
    %c0_i32_1 = arith.constant 0 : i32
    %c0_i32_2 = arith.constant 0 : i32
    return %c0_i32, %c0_i32_0, %c0_i32_1 : i32, i32, i32
  }
  func.func @transform_2(%arg0: i32) -> (i32, i32) {
    %c0_i32 = arith.constant 0 : i32
    %c0_i32_0 = arith.constant 0 : i32
    %c0_i32_1 = arith.constant 0 : i32
    return %c0_i32, %c0_i32_0 : i32, i32
  }
  func.func @transform_3(%arg0: i32) -> (i32, i32, i32) {
    %c0_i32 = arith.constant 0 : i32
    %c0_i32_0 = arith.constant 0 : i32
    %c0_i32_1 = arith.constant 0 : i32
    return %arg0, %c0_i32, %c0_i32_0 : i32, i32, i32
  }
}

</mosaic_0001>

<llo_original>
// kernel: tpu_custom_call.1
$region0: #{tpu_custom_call.1}
  #allocation0 [shape = 'u32[]', space=smem, size = 0x4, offset = 0x4, fixed_abs, tag = 'smem constant byte address 0x4 - core index']
  #allocation1 [shape = 'u32[144,128]{1,0:T(1,128)}', space=vmem, size = 0x12000, scoped, tag = 'internal scratch']
  %s0 = inlined_call_operand.vmem [shape: f32[2,4,256], index: 0, kind: input, shape index: {}]
  %s1 = inlined_call_operand.vmem [shape: f32[9,8,4], index: 1, kind: input, shape index: {}]
  %s2 = inlined_call_operand.vmem [shape: f32[8,1], index: 2, kind: input, shape index: {}]
  %s3 = inlined_call_operand.hbm [shape: f32[2,8,256], index: 3, kind: output, shape index: {}]
  %s4 = sld [smem:[#allocation0]]
  $region45: #{tpu_custom_call.1} parent=0
    _
  %s6 = ssub.s32 1, %s4
  %s7 = scalar_select 0, %s6, %s4
  $region1: #{tpu_custom_call.1} parent=0
    #allocation2 [shape = 'u8[16384]{0}', space=vmem, size = 0x4000, scoped, tag = 'output window, operand 0']
    #allocation3 [shape = 's32[2]{0}', space=sflag, size = 0x8, scoped, tag = 'scoped memory for tpu_custom_call.1']
    %8 = vsyncpa [#allocation3], 0
    %s9 = scalar_lea.sflag [#allocation3], 1
    %10 = vsyncpa %s9, 0
    loop: start=0, step=1, limit=4
    $region2: #{tpu_custom_call.1} parent=1 // loop_pre_header
      _
    $region3: #{tpu_custom_call.1} parent=1 // loop_header
      %s12 = sphi 0, %s16
      %p13 = scmp.ge.s32.totalorder %s12, 4
      %s22 = sphi 0, %s24
      %s25 = sphi 0, %s22
      %s26 = sphi 0, %s25
      %s42 = sphi 0, %s26
      %s46 = sphi 0, %s46
      %s48 = sphi 0, %s46
      %s49 = sphi 0, %s48
      %s63 = sphi 0, %s49
      %s67 = sphi 0, %s67
      %s69 = sphi 0, %s67
      %s70 = sphi 0, %s69
      %s84 = sphi 0, %s70
      %s90 = sphi 0, %s92
      %s93 = sphi 0, %s90
      %s94 = sphi 0, %s93
      %s110 = sphi 0, %s94
    $region4: #{tpu_custom_call.1} parent=1 // loop_header_branch
      %15 = sbr.rel (%p13) target = $region8
    $region5: #{tpu_custom_call.1} parent=1 // loop_body
      %s17 = ssub.s32 %s12, 1
      %s18 = ssub.s32 %s12, 2
      %s19 = sadd.s32 %s12, 1
      %s20 = ssub.s32 %s12, %s19
      %p21 = scmp.eq.s32.totalorder %s20, 0
      %s23 = sadd.s32 %s22, 1
      %s24 = scalar_select %p21, %s22, %s23
      %p27 = pneg %p21
      %p28 = scmp.eq.s32.totalorder %s12, 1
      %p29 = por %p27, %p28
      %p30 = scmp.ne.s32.totalorder %s22, %s25
      %p31 = scmp.eq.s32.totalorder %s12, 0
      %p32 = por %p30, %p31
      %p33 = scmp.ne.s32.totalorder %s22, %s25
      %p34 = scmp.eq.s32.totalorder %s17, 1
      %p35 = por %p33, %p34
      %p36 = scmp.ne.s32.totalorder %s25, %s26
      %p37 = scmp.eq.s32.totalorder %s17, 0
      %p38 = por %p36, %p37
      %p39 = scmp.ne.s32.totalorder %s25, %s26
      %p40 = scmp.eq.s32.totalorder %s18, 1
      %p41 = por %p39, %p40
      %p43 = scmp.ne.s32.totalorder %s26, %s42
      %p44 = scmp.eq.s32.totalorder %s18, 0
      %p45 = por %p43, %p44
      %s47 = sadd.s32 %s46, 1
      %p50 = scmp.eq.s32.totalorder %s12, 1
      %p51 = scmp.ne.s32.totalorder %s46, %s48
      %p52 = scmp.eq.s32.totalorder %s12, 0
      %p53 = por %p51, %p52
      %p54 = scmp.ne.s32.totalorder %s46, %s48
      %p55 = scmp.eq.s32.totalorder %s17, 1
      %p56 = por %p54, %p55
      %p57 = scmp.ne.s32.totalorder %s48, %s49
      %p58 = scmp.eq.s32.totalorder %s17, 0
      %p59 = por %p57, %p58
      %p60 = scmp.ne.s32.totalorder %s48, %s49
      %p61 = scmp.eq.s32.totalorder %s18, 1
      %p62 = por %p60, %p61
      %p64 = scmp.ne.s32.totalorder %s49, %s63
      %p65 = scmp.eq.s32.totalorder %s18, 0
      %p66 = por %p64, %p65
      %s68 = sadd.s32 %s67, 1
      %p71 = scmp.eq.s32.totalorder %s12, 1
      %p72 = scmp.ne.s32.totalorder %s67, %s69
      %p73 = scmp.eq.s32.totalorder %s12, 0
      %p74 = por %p72, %p73
      %p75 = scmp.ne.s32.totalorder %s67, %s69
      %p76 = scmp.eq.s32.totalorder %s17, 1
      %p77 = por %p75, %p76
      %p78 = scmp.ne.s32.totalorder %s69, %s70
      %p79 = scmp.eq.s32.totalorder %s17, 0
      %p80 = por %p78, %p79
      %p81 = scmp.ne.s32.totalorder %s69, %s70
      %p82 = scmp.eq.s32.totalorder %s18, 1
      %p83 = por %p81, %p82
      %p85 = scmp.ne.s32.totalorder %s70, %s84
      %p86 = scmp.eq.s32.totalorder %s18, 0
      %p87 = por %p85, %p86
      %s88 = ssub.s32 %s12, %s19
      %p89 = scmp.eq.s32.totalorder %s88, 0
      %s91 = sadd.s32 %s90, 1
      %s92 = scalar_select %p89, %s90, %s91
      %p95 = pneg %p89
      %p96 = scmp.eq.s32.totalorder %s12, 1
      %p97 = por %p95, %p96
      %p98 = scmp.ne.s32.totalorder %s90, %s93
      %p99 = scmp.eq.s32.totalorder %s12, 0
      %p100 = por %p98, %p99
      %p101 = scmp.ne.s32.totalorder %s90, %s93
      %p102 = scmp.eq.s32.totalorder %s17, 1
      %p103 = por %p101, %p102
      %p104 = scmp.ne.s32.totalorder %s93, %s94
      %p105 = scmp.eq.s32.totalorder %s17, 0
      %p106 = por %p104, %p105
      %p107 = scmp.ne.s32.totalorder %s93, %s94
      %p108 = scmp.eq.s32.totalorder %s18, 1
      %p109 = por %p107, %p108
      %p111 = scmp.ne.s32.totalorder %s94, %s110
      %p112 = scmp.eq.s32.totalorder %s18, 0
      %p113 = por %p111, %p112
      %p114 = scmp.le.s32.totalorder 1, %s12
      %p115 = scmp.lt.s32.totalorder %s12, 3
      %p116 = pnand %p114, %p115
      %p117 = pneg %p116
      // Predicated region
      $region9: #{tpu_custom_call.1} parent=5 // pred_check
        _
      $region10: #{tpu_custom_call.1} parent=5 // pred_check_branch
        %119 = sbr.rel (%p116) target = $region12
      $region11: #{tpu_custom_call.1} parent=5 // pred_region
        %s120 = ssub.s32 %s12, 1
        // Predicated region
        $region13: #{tpu_custom_call.1} parent=11 // pred_check
          %p121 = pneg %p59
        $region14: #{tpu_custom_call.1} parent=11 // pred_check_branch
          %123 = sbr.rel (%p121) target = $region16
        $region15: #{tpu_custom_call.1} parent=11 // pred_region
          _
        $region16: #{tpu_custom_call.1} parent=11 // pred_fallthru
          _
        // Predicated region
        $region17: #{tpu_custom_call.1} parent=11 // pred_check
          %p124 = pneg %p80
        $region18: #{tpu_custom_call.1} parent=11 // pred_check_branch
          %126 = sbr.rel (%p124) target = $region20
        $region19: #{tpu_custom_call.1} parent=11 // pred_region
          _
        $region20: #{tpu_custom_call.1} parent=11 // pred_fallthru
          _
      $region12: #{tpu_custom_call.1} parent=5 // pred_fallthru
        _
      %p127 = scmp.lt.s32.totalorder %s12, 2
      // Predicated region
      $region21: #{tpu_custom_call.1} parent=5 // pred_check
        %p128 = pneg %p127
      $region22: #{tpu_custom_call.1} parent=5 // pred_check_branch
        %130 = sbr.rel (%p128) target = $region24
      $region23: #{tpu_custom_call.1} parent=5 // pred_region
        // Predicated region
        $region25: #{tpu_custom_call.1} parent=23 // pred_check
          %p131 = pneg %p32
        $region26: #{tpu_custom_call.1} parent=23 // pred_check_branch
          %133 = sbr.rel (%p131) target = $region28
        $region27: #{tpu_custom_call.1} parent=23 // pred_region
          %p134 = scmp.lt.s32.totalorder %s12, 1
          %s135 = scalar_select %p134, %s12, 1
          %s136 = smul.addr %s135, 2
          %s137 = smul.addr %s136, 4
          %s138 = scalar_lea.vmem %s0, %s137
        $region28: #{tpu_custom_call.1} parent=23 // pred_fallthru
          _
      $region24: #{tpu_custom_call.1} parent=5 // pred_fallthru
        _
      %p139 = scmp.le.s32.totalorder 1, %s12
      %p140 = scmp.lt.s32.totalorder %s12, 3
      %p141 = pnand %p139, %p140
      %p142 = pneg %p141
      // Predicated region
      $region29: #{tpu_custom_call.1} parent=5 // pred_check
        _
      $region30: #{tpu_custom_call.1} parent=5 // pred_check_branch
        %144 = sbr.rel (%p141) target = $region32
      $region31: #{tpu_custom_call.1} parent=5 // pred_region
        %s145 = ssub.s32 %s12, 1
        %p146 = scmp.lt.s32.totalorder %s17, 1
        %s147 = scalar_select %p146, %s17, 1
        %s148 = smul.addr %s147, 2
        %s149 = smul.addr %s148, 4
        %s150 = scalar_lea.vmem %s0, %s149
        %p151 = pneg %p38
        %p152 = pneg %p35
        %p153 = pneg %p59
        %p154 = pneg %p56
        %p155 = pneg %p80
        %p156 = pneg %p77
        %p157 = pneg %p106
        %p158 = pneg %p103
        %s159 = sand.u32 %s93, 1
        %s160 = scalar_lea.sflag [#allocation3], %s159
        %s161 = sand.u32 %s93, 1
        %s162 = smul.addr %s161, 16
        %s163 = scalar_lea.vmem [#allocation2], %s162
        %p164 = scmp.lt.s32.totalorder %s17, 1
        %s165 = scalar_select %p164, %s17, 1
        %s166 = smul.addr %s165, 2
        %s167 = smul.addr %s166, 4
        %s168 = scalar_lea.vmem %s0, %s167
        %v169 = vld [vmem:[%s168] sm:$0xff]
        %v170 = vlaneseq
        %v171 = vand.u32 %v170, 127
        %v172 = vadd.s32 %v171, 128
        %v173 = vcvt.s32.f32 %v171
        %v174 = vcvt.s32.f32 %v172
        %v175 = vadd.f32 %v173, 0.5
        %v176 = vadd.f32 %v174, 0.5
        %v177 = vmul.f32 %v175, 0.0625
        %v178 = vmul.f32 %v176, 0.0625
        %v179 = vfloor.f32 %v177
        %v180 = vfloor.f32 %v178
        %v181 = vmul.f32 %v179, 16.0
        %v182 = vmul.f32 %v180, 16.0
        %v183 = vsub.f32 %v173, %v181
        %v184 = vsub.f32 %v174, %v182
        %v186 = vcombine.high %v169, %v169
        %187 = vrot.lane.b32.xlu0 %v186, 17
        %v188 = vpop.permute.xlu0 %187
        %190 = vrot.lane.b32.xlu0 %v169, 17
        %v191 = vpop.permute.xlu0 %190
        %vm192 = vcmask 138240
        %v193 = vsel %vm192, %v191, %v188
        %v196 = vsel %vm192, %v188, %v191
        %vm197 = vcmp.ge.f32.partialorder %v179, 1.0
        %vm198 = vcmp.ge.f32.partialorder %v180, 1.0
        %vm199 = vcmp.ge.f32.partialorder %v183, 1.0
        %vm200 = vcmp.ge.f32.partialorder %v184, 1.0
        %vm201 = vmand %vm197, %vm199
        %vm202 = vmand %vm198, %vm200
        %v203 = vsel %vm201, 1, 0
        %v204 = vsel %vm202, 1, 0
        %vm205 = vcmp.eq.s32.totalorder %v203, 1
        %vm206 = vcmp.eq.s32.totalorder %v204, 1
        %v207 = vsel %vm205, %v196, 0.0
        %v208 = vsel %vm206, %v193, 0.0
        %v209 = vld [vmem:[%s1] sm:$0xff]
        %210 = vrot.lane.b32.xlu0 %v186, 16
        %v211 = vpop.permute.xlu0 %210
        %213 = vrot.lane.b32.xlu0 %v169, 16
        %v214 = vpop.permute.xlu0 %213
        %vm215 = vcmask 130048
        %v216 = vsel %vm215, %v214, %v211
        %v219 = vsel %vm215, %v211, %v214
        %v220 = vsel %vm197, 1, 0
        %v221 = vsel %vm198, 1, 0
        %vm222 = vcmp.eq.s32.totalorder %v220, 1
        %vm223 = vcmp.eq.s32.totalorder %v221, 1
        %v224 = vsel %vm222, %v219, 0.0
        %v225 = vsel %vm223, %v216, 0.0
        %s226 = scalar_lea.vmem %s1, 8
        %v227 = vld [vmem:[%s226] sm:$0xff]
        %vm228 = vcmask 31744
        %v230 = vsel %vm228, %v227, 0
        %vm232 = vcmask 1043456
        %v234 = vsel %vm232, %v224, 0
        %v237 = vsel %vm232, %v225, 0
        %239 = vmatprep.subr.mxu0 0.0
        %240 = vmatpush1.msra.mxu0 0.0
        %241 = vmatprep.subr.mxu0 0.0
        %242 = vmatpush1.msra.mxu0 0.0
        %243 = vmatprep.subr.mxu0 0.0
        %244 = vmatpush1.msra.mxu0 0.0
        %245 = vmatprep.subr.mxu0 0.0
        %246 = vmatpush1.msra.mxu0 0.0
        %247 = vmatprep.subr.mxu0 0.0
        %248 = vmatpush1.msra.mxu0 0.0
        %249 = vmatprep.subr.mxu0 0.0
        %250 = vmatpush1.msra.mxu0 0.0
        %251 = vmatprep.subr.mxu0 0.0
        %252 = vmatpush1.msra.mxu0 0.0
        %253 = vmatprep.subr.mxu0 0.0
        %254 = vmatpush1.msra.mxu0 0.0
        %255 = vmatprep.subr.mxu0 0.0
        %256 = vmatpush1.msra.mxu0 0.0
        %257 = vmatprep.subr.mxu0 0.0
        %258 = vmatpush1.msra.mxu0 0.0
        %259 = vmatprep.subr.mxu0 0.0
        %260 = vmatpush1.msra.mxu0 0.0
        %261 = vmatprep.subr.mxu0 0.0
        %262 = vmatpush1.msra.mxu0 0.0
        %263 = vmatprep.subr.mxu0 0.0
        %264 = vmatpush1.msra.mxu0 0.0
        %265 = vmatprep.subr.mxu0 0.0
        %266 = vmatpush1.msra.mxu0 0.0
        %267 = vmatprep.subr.mxu0 0.0
        %268 = vmatpush1.msra.mxu0 0.0
        %269 = vmatprep.subr.mxu0 %v237
        %270 = vmatpush1.msra.mxu0 %v234
        %271 = vmatprep.subr.mxu0 0.0
        %272 = vmatpush2.msra.mxu0 0.0
        %273 = vmatprep.subr.mxu0 0.0
        %274 = vmatpush2.msra.mxu0 0.0
        %275 = vmatprep.subr.mxu0 0.0
        %276 = vmatpush2.msra.mxu0 0.0
        %277 = vmatprep.subr.mxu0 0.0
        %278 = vmatpush2.msra.mxu0 0.0
        %279 = vmatprep.subr.mxu0 0.0
        %280 = vmatpush2.msra.mxu0 0.0
        %281 = vmatprep.subr.mxu0 0.0
        %282 = vmatpush2.msra.mxu0 0.0
        %283 = vmatprep.subr.mxu0 0.0
        %284 = vmatpush2.msra.mxu0 0.0
        %285 = vmatprep.subr.mxu0 0.0
        %286 = vmatpush2.msra.mxu0 0.0
        %287 = vmatprep.subr.mxu0 0.0
        %288 = vmatpush2.msra.mxu0 0.0
        %289 = vmatprep.subr.mxu0 0.0
        %290 = vmatpush2.msra.mxu0 0.0
        %291 = vmatprep.subr.mxu0 0.0
        %292 = vmatpush2.msra.mxu0 0.0
        %293 = vmatprep.subr.mxu0 0.0
        %294 = vmatpush2.msra.mxu0 0.0
        %295 = vmatprep.subr.mxu0 0.0
        %296 = vmatpush2.msra.mxu0 0.0
        %297 = vmatprep.subr.mxu0 0.0
        %298 = vmatpush2.msra.mxu0 0.0
        %299 = vmatprep.subr.mxu0 0.0
        %300 = vmatpush2.msra.mxu0 0.0
        %301 = vmatprep.subr.mxu0 0.0
        %302 = vmatpush2.msra.mxu0 0.0
        %303 = vmatprep.mubr.f32.mxu0 0.0
        %304 = vmatmul.mubr.f32.gmra.mxu0 %v230
        %v305 = vpop.f32.mrf.mxu0
        %v306 = vadd.f32 0.0, %v305
        %v307 = vpop.f32.mrf.mxu0
        %v308 = vadd.f32 0.0, %v307
        %309 = vdwg.mxu0
        %v311 = vsel %vm228, %v209, 0
        %v314 = vsel %vm232, %v207, 0
        %v317 = vsel %vm232, %v208, 0
        %319 = vmatprep.subr.mxu0 0.0
        %320 = vmatpush1.msra.mxu0 0.0
        %321 = vmatprep.subr.mxu0 0.0
        %322 = vmatpush1.msra.mxu0 0.0
        %323 = vmatprep.subr.mxu0 0.0
        %324 = vmatpush1.msra.mxu0 0.0
        %325 = vmatprep.subr.mxu0 0.0
        %326 = vmatpush1.msra.mxu0 0.0
        %327 = vmatprep.subr.mxu0 0.0
        %328 = vmatpush1.msra.mxu0 0.0
        %329 = vmatprep.subr.mxu0 0.0
        %330 = vmatpush1.msra.mxu0 0.0
        %331 = vmatprep.subr.mxu0 0.0
        %332 = vmatpush1.msra.mxu0 0.0
        %333 = vmatprep.subr.mxu0 0.0
        %334 = vmatpush1.msra.mxu0 0.0
        %335 = vmatprep.subr.mxu0 0.0
        %336 = vmatpush1.msra.mxu0 0.0
        %337 = vmatprep.subr.mxu0 0.0
        %338 = vmatpush1.msra.mxu0 0.0
        %339 = vmatprep.subr.mxu0 0.0
        %340 = vmatpush1.msra.mxu0 0.0
        %341 = vmatprep.subr.mxu0 0.0
        %342 = vmatpush1.msra.mxu0 0.0
        %343 = vmatprep.subr.mxu0 0.0
        %344 = vmatpush1.msra.mxu0 0.0
        %345 = vmatprep.subr.mxu0 0.0
        %346 = vmatpush1.msra.mxu0 0.0
        %347 = vmatprep.subr.mxu0 0.0
        %348 = vmatpush1.msra.mxu0 0.0
        %349 = vmatprep.subr.mxu0 %v317
        %350 = vmatpush1.msra.mxu0 %v314
        %351 = vmatprep.subr.mxu0 0.0
        %352 = vmatpush2.msra.mxu0 0.0
        %353 = vmatprep.subr.mxu0 0.0
        %354 = vmatpush2.msra.mxu0 0.0
        %355 = vmatprep.subr.mxu0 0.0
        %356 = vmatpush2.msra.mxu0 0.0
        %357 = vmatprep.subr.mxu0 0.0
        %358 = vmatpush2.msra.mxu0 0.0
        %359 = vmatprep.subr.mxu0 0.0
        %360 = vmatpush2.msra.mxu0 0.0
        %361 = vmatprep.subr.mxu0 0.0
        %362 = vmatpush2.msra.mxu0 0.0
        %363 = vmatprep.subr.mxu0 0.0
        %364 = vmatpush2.msra.mxu0 0.0
        %365 = vmatprep.subr.mxu0 0.0
        %366 = vmatpush2.msra.mxu0 0.0
        %367 = vmatprep.subr.mxu0 0.0
        %368 = vmatpush2.msra.mxu0 0.0
        %369 = vmatprep.subr.mxu0 0.0
        %370 = vmatpush2.msra.mxu0 0.0
        %371 = vmatprep.subr.mxu0 0.0
        %372 = vmatpush2.msra.mxu0 0.0
        %373 = vmatprep.subr.mxu0 0.0
        %374 = vmatpush2.msra.mxu0 0.0
        %375 = vmatprep.subr.mxu0 0.0
        %376 = vmatpush2.msra.mxu0 0.0
        %377 = vmatprep.subr.mxu0 0.0
        %378 = vmatpush2.msra.mxu0 0.0
        %379 = vmatprep.subr.mxu0 0.0
        %380 = vmatpush2.msra.mxu0 0.0
        %381 = vmatprep.subr.mxu0 0.0
        %382 = vmatpush2.msra.mxu0 0.0
        %383 = vmatprep.mubr.f32.mxu0 0.0
        %384 = vmatmul.mubr.f32.gmra.mxu0 %v311
        %v385 = vpop.f32.mrf.mxu0
        %v386 = vadd.f32 %v306, %v385
        %v387 = vpop.f32.mrf.mxu0
        %v388 = vadd.f32 %v308, %v387
        %389 = vdwg.mxu0
        %390 = vrot.lane.b32.xlu0 %v186, 15
        %v391 = vpop.permute.xlu0 %390
        %393 = vrot.lane.b32.xlu0 %v169, 15
        %v394 = vpop.permute.xlu0 %393
        %vm395 = vcmask 121856
        %v396 = vsel %vm395, %v394, %v391
        %v399 = vsel %vm395, %v391, %v394
        %vm400 = vcmp.le.f32.partialorder %v183, 14.0
        %vm401 = vcmp.le.f32.partialorder %v184, 14.0
        %vm402 = vmand %vm197, %vm400
        %vm403 = vmand %vm198, %vm401
        %v404 = vsel %vm402, 1, 0
        %v405 = vsel %vm403, 1, 0
        %vm406 = vcmp.eq.s32.totalorder %v404, 1
        %vm407 = vcmp.eq.s32.totalorder %v405, 1
        %v408 = vsel %vm406, %v399, 0.0
        %v409 = vsel %vm407, %v396, 0.0
        %s410 = scalar_lea.vmem %s1, 16
        %v411 = vld [vmem:[%s410] sm:$0xff]
        %v413 = vsel %vm228, %v411, 0
        %v416 = vsel %vm232, %v408, 0
        %v419 = vsel %vm232, %v409, 0
        %421 = vmatprep.subr.mxu0 0.0
        %422 = vmatpush1.msra.mxu0 0.0
        %423 = vmatprep.subr.mxu0 0.0
        %424 = vmatpush1.msra.mxu0 0.0
        %425 = vmatprep.subr.mxu0 0.0
        %426 = vmatpush1.msra.mxu0 0.0
        %427 = vmatprep.subr.mxu0 0.0
        %428 = vmatpush1.msra.mxu0 0.0
        %429 = vmatprep.subr.mxu0 0.0
        %430 = vmatpush1.msra.mxu0 0.0
        %431 = vmatprep.subr.mxu0 0.0
        %432 = vmatpush1.msra.mxu0 0.0
        %433 = vmatprep.subr.mxu0 0.0
        %434 = vmatpush1.msra.mxu0 0.0
        %435 = vmatprep.subr.mxu0 0.0
        %436 = vmatpush1.msra.mxu0 0.0
        %437 = vmatprep.subr.mxu0 0.0
        %438 = vmatpush1.msra.mxu0 0.0
        %439 = vmatprep.subr.mxu0 0.0
        %440 = vmatpush1.msra.mxu0 0.0
        %441 = vmatprep.subr.mxu0 0.0
        %442 = vmatpush1.msra.mxu0 0.0
        %443 = vmatprep.subr.mxu0 0.0
        %444 = vmatpush1.msra.mxu0 0.0
        %445 = vmatprep.subr.mxu0 0.0
        %446 = vmatpush1.msra.mxu0 0.0
        %447 = vmatprep.subr.mxu0 0.0
        %448 = vmatpush1.msra.mxu0 0.0
        %449 = vmatprep.subr.mxu0 0.0
        %450 = vmatpush1.msra.mxu0 0.0
        %451 = vmatprep.subr.mxu0 %v419
        %452 = vmatpush1.msra.mxu0 %v416
        %453 = vmatprep.subr.mxu0 0.0
        %454 = vmatpush2.msra.mxu0 0.0
        %455 = vmatprep.subr.mxu0 0.0
        %456 = vmatpush2.msra.mxu0 0.0
        %457 = vmatprep.subr.mxu0 0.0
        %458 = vmatpush2.msra.mxu0 0.0
        %459 = vmatprep.subr.mxu0 0.0
        %460 = vmatpush2.msra.mxu0 0.0
        %461 = vmatprep.subr.mxu0 0.0
        %462 = vmatpush2.msra.mxu0 0.0
        %463 = vmatprep.subr.mxu0 0.0
        %464 = vmatpush2.msra.mxu0 0.0
        %465 = vmatprep.subr.mxu0 0.0
        %466 = vmatpush2.msra.mxu0 0.0
        %467 = vmatprep.subr.mxu0 0.0
        %468 = vmatpush2.msra.mxu0 0.0
        %469 = vmatprep.subr.mxu0 0.0
        %470 = vmatpush2.msra.mxu0 0.0
        %471 = vmatprep.subr.mxu0 0.0
        %472 = vmatpush2.msra.mxu0 0.0
        %473 = vmatprep.subr.mxu0 0.0
        %474 = vmatpush2.msra.mxu0 0.0
        %475 = vmatprep.subr.mxu0 0.0
        %476 = vmatpush2.msra.mxu0 0.0
        %477 = vmatprep.subr.mxu0 0.0
        %478 = vmatpush2.msra.mxu0 0.0
        %479 = vmatprep.subr.mxu0 0.0
        %480 = vmatpush2.msra.mxu0 0.0
        %481 = vmatprep.subr.mxu0 0.0
        %482 = vmatpush2.msra.mxu0 0.0
        %483 = vmatprep.subr.mxu0 0.0
        %484 = vmatpush2.msra.mxu0 0.0
        %485 = vmatprep.mubr.f32.mxu0 0.0
        %486 = vmatmul.mubr.f32.gmra.mxu0 %v413
        %v487 = vpop.f32.mrf.mxu0
        %v488 = vadd.f32 0.0, %v487
        %v489 = vpop.f32.mrf.mxu0
        %v490 = vadd.f32 0.0, %v489
        %491 = vdwg.mxu0
        %v492 = vadd.f32 %v386, %v488
        %v493 = vadd.f32 %v388, %v490
        %494 = vrot.lane.b32.xlu0 %v186, 1
        %v495 = vpop.permute.xlu0 %494
        %497 = vrot.lane.b32.xlu0 %v169, 1
        %v498 = vpop.permute.xlu0 %497
        %vm499 = vcmask 7168
        %v500 = vsel %vm499, %v498, %v495
        %v503 = vsel %vm499, %v495, %v498
        %v504 = vsel %vm199, 1, 0
        %v505 = vsel %vm200, 1, 0
        %vm506 = vcmp.eq.s32.totalorder %v504, 1
        %vm507 = vcmp.eq.s32.totalorder %v505, 1
        %v508 = vsel %vm506, %v503, 0.0
        %v509 = vsel %vm507, %v500, 0.0
        %s510 = scalar_lea.vmem %s1, 24
        %v511 = vld [vmem:[%s510] sm:$0xff]
        %v513 = vsel %vm228, %v511, 0
        %v516 = vsel %vm232, %v508, 0
        %v519 = vsel %vm232, %v509, 0
        %521 = vmatprep.subr.mxu0 0.0
        %522 = vmatpush1.msra.mxu0 0.0
        %523 = vmatprep.subr.mxu0 0.0
        %524 = vmatpush1.msra.mxu0 0.0
        %525 = vmatprep.subr.mxu0 0.0
        %526 = vmatpush1.msra.mxu0 0.0
        %527 = vmatprep.subr.mxu0 0.0
        %528 = vmatpush1.msra.mxu0 0.0
        %529 = vmatprep.subr.mxu0 0.0
        %530 = vmatpush1.msra.mxu0 0.0
        %531 = vmatprep.subr.mxu0 0.0
        %532 = vmatpush1.msra.mxu0 0.0
        %533 = vmatprep.subr.mxu0 0.0
        %534 = vmatpush1.msra.mxu0 0.0
        %535 = vmatprep.subr.mxu0 0.0
        %536 = vmatpush1.msra.mxu0 0.0
        %537 = vmatprep.subr.mxu0 0.0
        %538 = vmatpush1.msra.mxu0 0.0
        %539 = vmatprep.subr.mxu0 0.0
        %540 = vmatpush1.msra.mxu0 0.0
        %541 = vmatprep.subr.mxu0 0.0
        %542 = vmatpush1.msra.mxu0 0.0
        %543 = vmatprep.subr.mxu0 0.0
        %544 = vmatpush1.msra.mxu0 0.0
        %545 = vmatprep.subr.mxu0 0.0
        %546 = vmatpush1.msra.mxu0 0.0
        %547 = vmatprep.subr.mxu0 0.0
        %548 = vmatpush1.msra.mxu0 0.0
        %549 = vmatprep.subr.mxu0 0.0
        %550 = vmatpush1.msra.mxu0 0.0
        %551 = vmatprep.subr.mxu0 %v519
        %552 = vmatpush1.msra.mxu0 %v516
        %553 = vmatprep.subr.mxu0 0.0
        %554 = vmatpush2.msra.mxu0 0.0
        %555 = vmatprep.subr.mxu0 0.0
        %556 = vmatpush2.msra.mxu0 0.0
        %557 = vmatprep.subr.mxu0 0.0
        %558 = vmatpush2.msra.mxu0 0.0
        %559 = vmatprep.subr.mxu0 0.0
        %560 = vmatpush2.msra.mxu0 0.0
        %561 = vmatprep.subr.mxu0 0.0
        %562 = vmatpush2.msra.mxu0 0.0
        %563 = vmatprep.subr.mxu0 0.0
        %564 = vmatpush2.msra.mxu0 0.0
        %565 = vmatprep.subr.mxu0 0.0
        %566 = vmatpush2.msra.mxu0 0.0
        %567 = vmatprep.subr.mxu0 0.0
        %568 = vmatpush2.msra.mxu0 0.0
        %569 = vmatprep.subr.mxu0 0.0
        %570 = vmatpush2.msra.mxu0 0.0
        %571 = vmatprep.subr.mxu0 0.0
        %572 = vmatpush2.msra.mxu0 0.0
        %573 = vmatprep.subr.mxu0 0.0
        %574 = vmatpush2.msra.mxu0 0.0
        %575 = vmatprep.subr.mxu0 0.0
        %576 = vmatpush2.msra.mxu0 0.0
        %577 = vmatprep.subr.mxu0 0.0
        %578 = vmatpush2.msra.mxu0 0.0
        %579 = vmatprep.subr.mxu0 0.0
        %580 = vmatpush2.msra.mxu0 0.0
        %581 = vmatprep.subr.mxu0 0.0
        %582 = vmatpush2.msra.mxu0 0.0
        %583 = vmatprep.subr.mxu0 0.0
        %584 = vmatpush2.msra.mxu0 0.0
        %585 = vmatprep.mubr.f32.mxu0 0.0
        %586 = vmatmul.mubr.f32.gmra.mxu0 %v513
        %v587 = vpop.f32.mrf.mxu0
        %v588 = vadd.f32 0.0, %v587
        %v589 = vpop.f32.mrf.mxu0
        %v590 = vadd.f32 0.0, %v589
        %591 = vdwg.mxu0
        %v592 = vadd.f32 %v492, %v588
        %v593 = vadd.f32 %v493, %v590
        %s594 = scalar_lea.vmem %s1, 32
        %v595 = vld [vmem:[%s594] sm:$0xff]
        %v597 = vsel %vm228, %v595, 0
        %v599 = vsel %vm232, %v169, 0
        %v601 = vsel %vm232, %v186, 0
        %603 = vmatprep.subr.mxu0 0.0
        %604 = vmatpush1.msra.mxu0 0.0
        %605 = vmatprep.subr.mxu0 0.0
        %606 = vmatpush1.msra.mxu0 0.0
        %607 = vmatprep.subr.mxu0 0.0
        %608 = vmatpush1.msra.mxu0 0.0
        %609 = vmatprep.subr.mxu0 0.0
        %610 = vmatpush1.msra.mxu0 0.0
        %611 = vmatprep.subr.mxu0 0.0
        %612 = vmatpush1.msra.mxu0 0.0
        %613 = vmatprep.subr.mxu0 0.0
        %614 = vmatpush1.msra.mxu0 0.0
        %615 = vmatprep.subr.mxu0 0.0
        %616 = vmatpush1.msra.mxu0 0.0
        %617 = vmatprep.subr.mxu0 0.0
        %618 = vmatpush1.msra.mxu0 0.0
        %619 = vmatprep.subr.mxu0 0.0
        %620 = vmatpush1.msra.mxu0 0.0
        %621 = vmatprep.subr.mxu0 0.0
        %622 = vmatpush1.msra.mxu0 0.0
        %623 = vmatprep.subr.mxu0 0.0
        %624 = vmatpush1.msra.mxu0 0.0
        %625 = vmatprep.subr.mxu0 0.0
        %626 = vmatpush1.msra.mxu0 0.0
        %627 = vmatprep.subr.mxu0 0.0
        %628 = vmatpush1.msra.mxu0 0.0
        %629 = vmatprep.subr.mxu0 0.0
        %630 = vmatpush1.msra.mxu0 0.0
        %631 = vmatprep.subr.mxu0 0.0
        %632 = vmatpush1.msra.mxu0 0.0
        %633 = vmatprep.subr.mxu0 %v601
        %634 = vmatpush1.msra.mxu0 %v599
        %635 = vmatprep.subr.mxu0 0.0
        %636 = vmatpush2.msra.mxu0 0.0
        %637 = vmatprep.subr.mxu0 0.0
        %638 = vmatpush2.msra.mxu0 0.0
        %639 = vmatprep.subr.mxu0 0.0
        %640 = vmatpush2.msra.mxu0 0.0
        %641 = vmatprep.subr.mxu0 0.0
        %642 = vmatpush2.msra.mxu0 0.0
        %643 = vmatprep.subr.mxu0 0.0
        %644 = vmatpush2.msra.mxu0 0.0
        %645 = vmatprep.subr.mxu0 0.0
        %646 = vmatpush2.msra.mxu0 0.0
        %647 = vmatprep.subr.mxu0 0.0
        %648 = vmatpush2.msra.mxu0 0.0
        %649 = vmatprep.subr.mxu0 0.0
        %650 = vmatpush2.msra.mxu0 0.0
        %651 = vmatprep.subr.mxu0 0.0
        %652 = vmatpush2.msra.mxu0 0.0
        %653 = vmatprep.subr.mxu0 0.0
        %654 = vmatpush2.msra.mxu0 0.0
        %655 = vmatprep.subr.mxu0 0.0
        %656 = vmatpush2.msra.mxu0 0.0
        %657 = vmatprep.subr.mxu0 0.0
        %658 = vmatpush2.msra.mxu0 0.0
        %659 = vmatprep.subr.mxu0 0.0
        %660 = vmatpush2.msra.mxu0 0.0
        %661 = vmatprep.subr.mxu0 0.0
        %662 = vmatpush2.msra.mxu0 0.0
        %663 = vmatprep.subr.mxu0 0.0
        %664 = vmatpush2.msra.mxu0 0.0
        %665 = vmatprep.subr.mxu0 0.0
        %666 = vmatpush2.msra.mxu0 0.0
        %667 = vmatprep.mubr.f32.mxu0 0.0
        %668 = vmatmul.mubr.f32.gmra.mxu0 %v597
        %v669 = vpop.f32.mrf.mxu0
        %v670 = vadd.f32 0.0, %v669
        %v671 = vpop.f32.mrf.mxu0
        %v672 = vadd.f32 0.0, %v671
        %673 = vdwg.mxu0
        %v674 = vadd.f32 %v592, %v670
        %v675 = vadd.f32 %v593, %v672
        %676 = vrot.lane.b32.xlu0 %v169, 127
        %v677 = vpop.permute.xlu0 %676
        %678 = vrot.lane.b32.xlu0 %v186, 127
        %v679 = vpop.permute.xlu0 %678
        %vm680 = vcmask 1039360
        %v681 = vsel %vm680, %v677, %v679
        %v685 = vsel %vm680, %v679, %v677
        %v686 = vsel %vm400, 1, 0
        %v687 = vsel %vm401, 1, 0
        %vm688 = vcmp.eq.s32.totalorder %v686, 1
        %vm689 = vcmp.eq.s32.totalorder %v687, 1
        %v690 = vsel %vm688, %v681, 0.0
        %v691 = vsel %vm689, %v685, 0.0
        %s692 = scalar_lea.vmem %s1, 40
        %v693 = vld [vmem:[%s692] sm:$0xff]
        %v695 = vsel %vm228, %v693, 0
        %v698 = vsel %vm232, %v690, 0
        %v701 = vsel %vm232, %v691, 0
        %703 = vmatprep.subr.mxu0 0.0
        %704 = vmatpush1.msra.mxu0 0.0
        %705 = vmatprep.subr.mxu0 0.0
        %706 = vmatpush1.msra.mxu0 0.0
        %707 = vmatprep.subr.mxu0 0.0
        %708 = vmatpush1.msra.mxu0 0.0
        %709 = vmatprep.subr.mxu0 0.0
        %710 = vmatpush1.msra.mxu0 0.0
        %711 = vmatprep.subr.mxu0 0.0
        %712 = vmatpush1.msra.mxu0 0.0
        %713 = vmatprep.subr.mxu0 0.0
        %714 = vmatpush1.msra.mxu0 0.0
        %715 = vmatprep.subr.mxu0 0.0
        %716 = vmatpush1.msra.mxu0 0.0
        %717 = vmatprep.subr.mxu0 0.0
        %718 = vmatpush1.msra.mxu0 0.0
        %719 = vmatprep.subr.mxu0 0.0
        %720 = vmatpush1.msra.mxu0 0.0
        %721 = vmatprep.subr.mxu0 0.0
        %722 = vmatpush1.msra.mxu0 0.0
        %723 = vmatprep.subr.mxu0 0.0
        %724 = vmatpush1.msra.mxu0 0.0
        %725 = vmatprep.subr.mxu0 0.0
        %726 = vmatpush1.msra.mxu0 0.0
        %727 = vmatprep.subr.mxu0 0.0
        %728 = vmatpush1.msra.mxu0 0.0
        %729 = vmatprep.subr.mxu0 0.0
        %730 = vmatpush1.msra.mxu0 0.0
        %731 = vmatprep.subr.mxu0 0.0
        %732 = vmatpush1.msra.mxu0 0.0
        %733 = vmatprep.subr.mxu0 %v701
        %734 = vmatpush1.msra.mxu0 %v698
        %735 = vmatprep.subr.mxu0 0.0
        %736 = vmatpush2.msra.mxu0 0.0
        %737 = vmatprep.subr.mxu0 0.0
        %738 = vmatpush2.msra.mxu0 0.0
        %739 = vmatprep.subr.mxu0 0.0
        %740 = vmatpush2.msra.mxu0 0.0
        %741 = vmatprep.subr.mxu0 0.0
        %742 = vmatpush2.msra.mxu0 0.0
        %743 = vmatprep.subr.mxu0 0.0
        %744 = vmatpush2.msra.mxu0 0.0
        %745 = vmatprep.subr.mxu0 0.0
        %746 = vmatpush2.msra.mxu0 0.0
        %747 = vmatprep.subr.mxu0 0.0
        %748 = vmatpush2.msra.mxu0 0.0
        %749 = vmatprep.subr.mxu0 0.0
        %750 = vmatpush2.msra.mxu0 0.0
        %751 = vmatprep.subr.mxu0 0.0
        %752 = vmatpush2.msra.mxu0 0.0
        %753 = vmatprep.subr.mxu0 0.0
        %754 = vmatpush2.msra.mxu0 0.0
        %755 = vmatprep.subr.mxu0 0.0
        %756 = vmatpush2.msra.mxu0 0.0
        %757 = vmatprep.subr.mxu0 0.0
        %758 = vmatpush2.msra.mxu0 0.0
        %759 = vmatprep.subr.mxu0 0.0
        %760 = vmatpush2.msra.mxu0 0.0
        %761 = vmatprep.subr.mxu0 0.0
        %762 = vmatpush2.msra.mxu0 0.0
        %763 = vmatprep.subr.mxu0 0.0
        %764 = vmatpush2.msra.mxu0 0.0
        %765 = vmatprep.subr.mxu0 0.0
        %766 = vmatpush2.msra.mxu0 0.0
        %767 = vmatprep.mubr.f32.mxu0 0.0
        %768 = vmatmul.mubr.f32.gmra.mxu0 %v695
        %v769 = vpop.f32.mrf.mxu0
        %v770 = vadd.f32 0.0, %v769
        %v771 = vpop.f32.mrf.mxu0
        %v772 = vadd.f32 0.0, %v771
        %773 = vdwg.mxu0
        %v774 = vadd.f32 %v674, %v770
        %v775 = vadd.f32 %v675, %v772
        %776 = vrot.lane.b32.xlu0 %v169, 113
        %v777 = vpop.permute.xlu0 %776
        %778 = vrot.lane.b32.xlu0 %v186, 113
        %v779 = vpop.permute.xlu0 %778
        %vm780 = vcmask 924672
        %v781 = vsel %vm780, %v777, %v779
        %v785 = vsel %vm780, %v779, %v777
        %vm786 = vcmp.le.f32.partialorder %v179, 14.0
        %vm787 = vcmp.le.f32.partialorder %v180, 14.0
        %vm788 = vmand %vm786, %vm199
        %vm789 = vmand %vm787, %vm200
        %v790 = vsel %vm788, 1, 0
        %v791 = vsel %vm789, 1, 0
        %vm792 = vcmp.eq.s32.totalorder %v790, 1
        %vm793 = vcmp.eq.s32.totalorder %v791, 1
        %v794 = vsel %vm792, %v781, 0.0
        %v795 = vsel %vm793, %v785, 0.0
        %s796 = scalar_lea.vmem %s1, 48
        %v797 = vld [vmem:[%s796] sm:$0xff]
        %v799 = vsel %vm228, %v797, 0
        %v802 = vsel %vm232, %v794, 0
        %v805 = vsel %vm232, %v795, 0
        %807 = vmatprep.subr.mxu0 0.0
        %808 = vmatpush1.msra.mxu0 0.0
        %809 = vmatprep.subr.mxu0 0.0
        %810 = vmatpush1.msra.mxu0 0.0
        %811 = vmatprep.subr.mxu0 0.0
        %812 = vmatpush1.msra.mxu0 0.0
        %813 = vmatprep.subr.mxu0 0.0
        %814 = vmatpush1.msra.mxu0 0.0
        %815 = vmatprep.subr.mxu0 0.0
        %816 = vmatpush1.msra.mxu0 0.0
        %817 = vmatprep.subr.mxu0 0.0
        %818 = vmatpush1.msra.mxu0 0.0
        %819 = vmatprep.subr.mxu0 0.0
        %820 = vmatpush1.msra.mxu0 0.0
        %821 = vmatprep.subr.mxu0 0.0
        %822 = vmatpush1.msra.mxu0 0.0
        %823 = vmatprep.subr.mxu0 0.0
        %824 = vmatpush1.msra.mxu0 0.0
        %825 = vmatprep.subr.mxu0 0.0
        %826 = vmatpush1.msra.mxu0 0.0
        %827 = vmatprep.subr.mxu0 0.0
        %828 = vmatpush1.msra.mxu0 0.0
        %829 = vmatprep.subr.mxu0 0.0
        %830 = vmatpush1.msra.mxu0 0.0
        %831 = vmatprep.subr.mxu0 0.0
        %832 = vmatpush1.msra.mxu0 0.0
        %833 = vmatprep.subr.mxu0 0.0
        %834 = vmatpush1.msra.mxu0 0.0
        %835 = vmatprep.subr.mxu0 0.0
        %836 = vmatpush1.msra.mxu0 0.0
        %837 = vmatprep.subr.mxu0 %v805
        %838 = vmatpush1.msra.mxu0 %v802
        %839 = vmatprep.subr.mxu0 0.0
        %840 = vmatpush2.msra.mxu0 0.0
        %841 = vmatprep.subr.mxu0 0.0
        %842 = vmatpush2.msra.mxu0 0.0
        %843 = vmatprep.subr.mxu0 0.0
        %844 = vmatpush2.msra.mxu0 0.0
        %845 = vmatprep.subr.mxu0 0.0
        %846 = vmatpush2.msra.mxu0 0.0
        %847 = vmatprep.subr.mxu0 0.0
        %848 = vmatpush2.msra.mxu0 0.0
        %849 = vmatprep.subr.mxu0 0.0
        %850 = vmatpush2.msra.mxu0 0.0
        %851 = vmatprep.subr.mxu0 0.0
        %852 = vmatpush2.msra.mxu0 0.0
        %853 = vmatprep.subr.mxu0 0.0
        %854 = vmatpush2.msra.mxu0 0.0
        %855 = vmatprep.subr.mxu0 0.0
        %856 = vmatpush2.msra.mxu0 0.0
        %857 = vmatprep.subr.mxu0 0.0
        %858 = vmatpush2.msra.mxu0 0.0
        %859 = vmatprep.subr.mxu0 0.0
        %860 = vmatpush2.msra.mxu0 0.0
        %861 = vmatprep.subr.mxu0 0.0
        %862 = vmatpush2.msra.mxu0 0.0
        %863 = vmatprep.subr.mxu0 0.0
        %864 = vmatpush2.msra.mxu0 0.0
        %865 = vmatprep.subr.mxu0 0.0
        %866 = vmatpush2.msra.mxu0 0.0
        %867 = vmatprep.subr.mxu0 0.0
        %868 = vmatpush2.msra.mxu0 0.0
        %869 = vmatprep.subr.mxu0 0.0
        %870 = vmatpush2.msra.mxu0 0.0
        %871 = vmatprep.mubr.f32.mxu0 0.0
        %872 = vmatmul.mubr.f32.gmra.mxu0 %v799
        %v873 = vpop.f32.mrf.mxu0
        %v874 = vadd.f32 0.0, %v873
        %v875 = vpop.f32.mrf.mxu0
        %v876 = vadd.f32 0.0, %v875
        %877 = vdwg.mxu0
        %v878 = vadd.f32 %v774, %v874
        %v879 = vadd.f32 %v775, %v876
        %880 = vrot.lane.b32.xlu0 %v169, 112
        %v881 = vpop.permute.xlu0 %880
        %882 = vrot.lane.b32.xlu0 %v186, 112
        %v883 = vpop.permute.xlu0 %882
        %vm884 = vcmask 916480
        %v885 = vsel %vm884, %v881, %v883
        %v889 = vsel %vm884, %v883, %v881
        %v890 = vsel %vm786, 1, 0
        %v891 = vsel %vm787, 1, 0
        %vm892 = vcmp.eq.s32.totalorder %v890, 1
        %vm893 = vcmp.eq.s32.totalorder %v891, 1
        %v894 = vsel %vm892, %v885, 0.0
        %v895 = vsel %vm893, %v889, 0.0
        %s896 = scalar_lea.vmem %s1, 56
        %v897 = vld [vmem:[%s896] sm:$0xff]
        %v899 = vsel %vm228, %v897, 0
        %v902 = vsel %vm232, %v894, 0
        %v905 = vsel %vm232, %v895, 0
        %907 = vmatprep.subr.mxu0 0.0
        %908 = vmatpush1.msra.mxu0 0.0
        %909 = vmatprep.subr.mxu0 0.0
        %910 = vmatpush1.msra.mxu0 0.0
        %911 = vmatprep.subr.mxu0 0.0
        %912 = vmatpush1.msra.mxu0 0.0
        %913 = vmatprep.subr.mxu0 0.0
        %914 = vmatpush1.msra.mxu0 0.0
        %915 = vmatprep.subr.mxu0 0.0
        %916 = vmatpush1.msra.mxu0 0.0
        %917 = vmatprep.subr.mxu0 0.0
        %918 = vmatpush1.msra.mxu0 0.0
        %919 = vmatprep.subr.mxu0 0.0
        %920 = vmatpush1.msra.mxu0 0.0
        %921 = vmatprep.subr.mxu0 0.0
        %922 = vmatpush1.msra.mxu0 0.0
        %923 = vmatprep.subr.mxu0 0.0
        %924 = vmatpush1.msra.mxu0 0.0
        %925 = vmatprep.subr.mxu0 0.0
        %926 = vmatpush1.msra.mxu0 0.0
        %927 = vmatprep.subr.mxu0 0.0
        %928 = vmatpush1.msra.mxu0 0.0
        %929 = vmatprep.subr.mxu0 0.0
        %930 = vmatpush1.msra.mxu0 0.0
        %931 = vmatprep.subr.mxu0 0.0
        %932 = vmatpush1.msra.mxu0 0.0
        %933 = vmatprep.subr.mxu0 0.0
        %934 = vmatpush1.msra.mxu0 0.0
        %935 = vmatprep.subr.mxu0 0.0
        %936 = vmatpush1.msra.mxu0 0.0
        %937 = vmatprep.subr.mxu0 %v905
        %938 = vmatpush1.msra.mxu0 %v902
        %939 = vmatprep.subr.mxu0 0.0
        %940 = vmatpush2.msra.mxu0 0.0
        %941 = vmatprep.subr.mxu0 0.0
        %942 = vmatpush2.msra.mxu0 0.0
        %943 = vmatprep.subr.mxu0 0.0
        %944 = vmatpush2.msra.mxu0 0.0
        %945 = vmatprep.subr.mxu0 0.0
        %946 = vmatpush2.msra.mxu0 0.0
        %947 = vmatprep.subr.mxu0 0.0
        %948 = vmatpush2.msra.mxu0 0.0
        %949 = vmatprep.subr.mxu0 0.0
        %950 = vmatpush2.msra.mxu0 0.0
        %951 = vmatprep.subr.mxu0 0.0
        %952 = vmatpush2.msra.mxu0 0.0
        %953 = vmatprep.subr.mxu0 0.0
        %954 = vmatpush2.msra.mxu0 0.0
        %955 = vmatprep.subr.mxu0 0.0
        %956 = vmatpush2.msra.mxu0 0.0
        %957 = vmatprep.subr.mxu0 0.0
        %958 = vmatpush2.msra.mxu0 0.0
        %959 = vmatprep.subr.mxu0 0.0
        %960 = vmatpush2.msra.mxu0 0.0
        %961 = vmatprep.subr.mxu0 0.0
        %962 = vmatpush2.msra.mxu0 0.0
        %963 = vmatprep.subr.mxu0 0.0
        %964 = vmatpush2.msra.mxu0 0.0
        %965 = vmatprep.subr.mxu0 0.0
        %966 = vmatpush2.msra.mxu0 0.0
        %967 = vmatprep.subr.mxu0 0.0
        %968 = vmatpush2.msra.mxu0 0.0
        %969 = vmatprep.subr.mxu0 0.0
        %970 = vmatpush2.msra.mxu0 0.0
        %971 = vmatprep.mubr.f32.mxu0 0.0
        %972 = vmatmul.mubr.f32.gmra.mxu0 %v899
        %v973 = vpop.f32.mrf.mxu0
        %v974 = vadd.f32 0.0, %v973
        %v975 = vpop.f32.mrf.mxu0
        %v976 = vadd.f32 0.0, %v975
        %977 = vdwg.mxu0
        %v978 = vadd.f32 %v878, %v974
        %v979 = vadd.f32 %v879, %v976
        %980 = vrot.lane.b32.xlu0 %v169, 111
        %v981 = vpop.permute.xlu0 %980
        %982 = vrot.lane.b32.xlu0 %v186, 111
        %v983 = vpop.permute.xlu0 %982
        %vm984 = vcmask 908288
        %v985 = vsel %vm984, %v981, %v983
        %v989 = vsel %vm984, %v983, %v981
        %vm990 = vmand %vm786, %vm400
        %vm991 = vmand %vm787, %vm401
        %v992 = vsel %vm990, 1, 0
        %v993 = vsel %vm991, 1, 0
        %vm994 = vcmp.eq.s32.totalorder %v992, 1
        %vm995 = vcmp.eq.s32.totalorder %v993, 1
        %v996 = vsel %vm994, %v985, 0.0
        %v997 = vsel %vm995, %v989, 0.0
        %s998 = scalar_lea.vmem %s1, 64
        %v999 = vld [vmem:[%s998] sm:$0xff]
        %v1001 = vsel %vm228, %v999, 0
        %v1004 = vsel %vm232, %v996, 0
        %v1007 = vsel %vm232, %v997, 0
        %1009 = vmatprep.subr.mxu0 0.0
        %1010 = vmatpush1.msra.mxu0 0.0
        %1011 = vmatprep.subr.mxu0 0.0
        %1012 = vmatpush1.msra.mxu0 0.0
        %1013 = vmatprep.subr.mxu0 0.0
        %1014 = vmatpush1.msra.mxu0 0.0
        %1015 = vmatprep.subr.mxu0 0.0
        %1016 = vmatpush1.msra.mxu0 0.0
        %1017 = vmatprep.subr.mxu0 0.0
        %1018 = vmatpush1.msra.mxu0 0.0
        %1019 = vmatprep.subr.mxu0 0.0
        %1020 = vmatpush1.msra.mxu0 0.0
        %1021 = vmatprep.subr.mxu0 0.0
        %1022 = vmatpush1.msra.mxu0 0.0
        %1023 = vmatprep.subr.mxu0 0.0
        %1024 = vmatpush1.msra.mxu0 0.0
        %1025 = vmatprep.subr.mxu0 0.0
        %1026 = vmatpush1.msra.mxu0 0.0
        %1027 = vmatprep.subr.mxu0 0.0
        %1028 = vmatpush1.msra.mxu0 0.0
        %1029 = vmatprep.subr.mxu0 0.0
        %1030 = vmatpush1.msra.mxu0 0.0
        %1031 = vmatprep.subr.mxu0 0.0
        %1032 = vmatpush1.msra.mxu0 0.0
        %1033 = vmatprep.subr.mxu0 0.0
        %1034 = vmatpush1.msra.mxu0 0.0
        %1035 = vmatprep.subr.mxu0 0.0
        %1036 = vmatpush1.msra.mxu0 0.0
        %1037 = vmatprep.subr.mxu0 0.0
        %1038 = vmatpush1.msra.mxu0 0.0
        %1039 = vmatprep.subr.mxu0 %v1007
        %1040 = vmatpush1.msra.mxu0 %v1004
        %1041 = vmatprep.subr.mxu0 0.0
        %1042 = vmatpush2.msra.mxu0 0.0
        %1043 = vmatprep.subr.mxu0 0.0
        %1044 = vmatpush2.msra.mxu0 0.0
        %1045 = vmatprep.subr.mxu0 0.0
        %1046 = vmatpush2.msra.mxu0 0.0
        %1047 = vmatprep.subr.mxu0 0.0
        %1048 = vmatpush2.msra.mxu0 0.0
        %1049 = vmatprep.subr.mxu0 0.0
        %1050 = vmatpush2.msra.mxu0 0.0
        %1051 = vmatprep.subr.mxu0 0.0
        %1052 = vmatpush2.msra.mxu0 0.0
        %1053 = vmatprep.subr.mxu0 0.0
        %1054 = vmatpush2.msra.mxu0 0.0
        %1055 = vmatprep.subr.mxu0 0.0
        %1056 = vmatpush2.msra.mxu0 0.0
        %1057 = vmatprep.subr.mxu0 0.0
        %1058 = vmatpush2.msra.mxu0 0.0
        %1059 = vmatprep.subr.mxu0 0.0
        %1060 = vmatpush2.msra.mxu0 0.0
        %1061 = vmatprep.subr.mxu0 0.0
        %1062 = vmatpush2.msra.mxu0 0.0
        %1063 = vmatprep.subr.mxu0 0.0
        %1064 = vmatpush2.msra.mxu0 0.0
        %1065 = vmatprep.subr.mxu0 0.0
        %1066 = vmatpush2.msra.mxu0 0.0
        %1067 = vmatprep.subr.mxu0 0.0
        %1068 = vmatpush2.msra.mxu0 0.0
        %1069 = vmatprep.subr.mxu0 0.0
        %1070 = vmatpush2.msra.mxu0 0.0
        %1071 = vmatprep.subr.mxu0 0.0
        %1072 = vmatpush2.msra.mxu0 0.0
        %1073 = vmatprep.mubr.f32.mxu0 0.0
        %1074 = vmatmul.mubr.f32.gmra.mxu0 %v1001
        %v1075 = vpop.f32.mrf.mxu0
        %v1076 = vadd.f32 0.0, %v1075
        %v1077 = vpop.f32.mrf.mxu0
        %v1078 = vadd.f32 0.0, %v1077
        %1079 = vdwg.mxu0
        %v1080 = vadd.f32 %v978, %v1076
        %v1081 = vadd.f32 %v979, %v1078
        %v1082 = vld [vmem:[%s2] sm:$0xff]
        %1084 = vset.pattern.permute.xlu0 0
        %1085 = vperm.xlu0 %1084, %v1082
        %v1086 = vpop.permute.xlu0 %1085
        %v1088 = vadd.f32 %v1080, %v1086
        %v1089 = vadd.f32 %v1081, %v1086
        %v1090 = vmax.f32 %v1088, 0.0
        %v1091 = vmax.f32 %v1089, 0.0
        %1092 = vst [vmem:[%s163] sm:$0xff] %v1090
        %1093 = vst [vmem:[%s163 + $0x8] sm:$0xff] %v1091
        %s1094 = sand.u32 %s93, 1
        %s1095 = scalar_lea.sflag [#allocation3], %s1094
        %s1096 = sand.u32 %s93, 1
        %s1097 = smul.addr %s1096, 16
        %s1098 = scalar_lea.vmem [#allocation2], %s1097
        // Predicated region
        $region33: #{tpu_custom_call.1} parent=31 // pred_check
          %p1099 = pneg %p103
        $region34: #{tpu_custom_call.1} parent=31 // pred_check_branch
          %1101 = sbr.rel (%p1099) target = $region36
        $region35: #{tpu_custom_call.1} parent=31 // pred_region
          %s1103 = ssub.s32 256, 256
          %1104 = vsyncadd %s1095, %s1103
          %s1105 = smul.addr %s17, 2
          %s1106 = smul.addr %s1105, 128
          %s1107 = scalar_lea.hbm %s3, %s1106
          %s1109 = sshll.u32 %s1098, 4
          %s1110 = int_to_ptr.vmem [resolvable:$true] %s1109
          %1112 = dma.vmem_to_hbm [thread:$0]  %s1110, 256, %s1107, %s1095
        $region36: #{tpu_custom_call.1} parent=31 // pred_fallthru
          _
      $region32: #{tpu_custom_call.1} parent=5 // pred_fallthru
        _
      %p1113 = scmp.le.s32.totalorder 2, %s12
      // Predicated region
      $region37: #{tpu_custom_call.1} parent=5 // pred_check
        %p1114 = pneg %p1113
      $region38: #{tpu_custom_call.1} parent=5 // pred_check_branch
        %1116 = sbr.rel (%p1114) target = $region40
      $region39: #{tpu_custom_call.1} parent=5 // pred_region
        %s1117 = ssub.s32 %s12, 2
        // Predicated region
        $region41: #{tpu_custom_call.1} parent=39 // pred_check
          %p1118 = pneg %p109
        $region42: #{tpu_custom_call.1} parent=39 // pred_check_branch
          %1120 = sbr.rel (%p1118) target = $region44
        $region43: #{tpu_custom_call.1} parent=39 // pred_region
          %s1121 = sand.u32 %s94, 1
          %s1122 = scalar_lea.sflag [#allocation3], %s1121
          %s1123 = sand.u32 %s94, 1
          %s1124 = smul.addr %s1123, 16
          %s1125 = scalar_lea.vmem [#allocation2], %s1124
          %1126 = dma.done %s1122, 256
        $region44: #{tpu_custom_call.1} parent=39 // pred_fallthru
          _
      $region40: #{tpu_custom_call.1} parent=5 // pred_fallthru
        _
    $region6: #{tpu_custom_call.1} parent=1 // loop_footer
      %s16 = sadd.s32 1, %s12
    $region7: #{tpu_custom_call.1} parent=1 // loop_footer_branch
      %11 = sbr.rel target = $region3
    $region8: #{tpu_custom_call.1} parent=1 // loop_exit
      _
    %1127 = vsyncpa [#allocation3], 1
    %s1128 = scalar_lea.sflag [#allocation3], 1
    %1129 = vsyncpa %s1128, 1

</llo_original>
